<compile_context>
chip_gen: v5e
topology: v5e:2x2
jax: 0.10.0
libtpu: 0.0.40
codegen_flags: <defaults>
</compile_context>

<pallas_src>
import functools

import jax
import jax.numpy as jnp
from jax.experimental import pallas as pl
from jax.experimental.pallas import tpu as pltpu

_LANE = 128
_SUB = 8
_FUSE_L2_MAX_EHP = 1024      # beyond this, keep W2 per-member (no block-diag blowup)
_BATCH_TILE_CAP = 2048       # review: 1024-2048 amortizes per-step overhead


def _round_up(x, m):
    return ((x + m - 1) // m) * m


def _cdiv(a, b):
    return -(-a // b)


def _choose_batch_tiling(batch):
    """Return (tile_rows, n_tiles).

    The lane-dense output block (out_rows, TB) of an (out_rows, B_pad) array requires
    TB == B_pad or TB % 128 == 0.  Small batches use one full tile (waste < 8 rows);
    large batches use >= 2 lane-aligned tiles so the 'parallel' grid axis shards across
    both v7x TensorCores.
    """
    b8 = _round_up(max(batch, 1), _SUB)
    if b8 < 256:                       # splitting tiny batches only adds per-step overhead
        return b8, 1
    n_tiles = max(2, _cdiv(b8, _BATCH_TILE_CAP))
    tb = _round_up(_cdiv(b8, n_tiles), _LANE)
    n_tiles = _cdiv(b8, tb)
    return tb, n_tiles


def _ensemble_z_kernel(x_ref, w1_ref, b1_ref, w2_ref, b2_ref, w3_ref, b3_ref, o_ref,
                       *, reduction, lam, fuse_l2, n_members, hidden):
    x = x_ref[...]                                                        # (TB, D)
    h1 = jnp.maximum(
        jnp.dot(x, w1_ref[...], preferred_element_type=jnp.float32) + b1_ref[...], 0.0)

    if fuse_l2:
        z2 = jnp.dot(h1.astype(w2_ref.dtype), w2_ref[...],
                     preferred_element_type=jnp.float32)                  # (TB, EHp)
    else:
        # Per-member fallback for large E*H: no (EH)^2 block-diagonal weight.
        h1c = h1.astype(w2_ref.dtype)
        parts = [
            jnp.dot(h1c[:, e * hidden:(e + 1) * hidden], w2_ref[e],
                    preferred_element_type=jnp.float32)
            for e in range(n_members)
        ]
        z2 = jnp.concatenate(parts, axis=-1)                              # (TB, E*H)
    h2 = jnp.maximum(z2 + b2_ref[...], 0.0)

    y = jnp.dot(h2.astype(w3_ref.dtype), w3_ref[...],
                preferred_element_type=jnp.float32) + b3_ref[...]         # (TB, 1) or (TB, E)

    if reduction in ("mean", "none"):      # mean is pre-folded into w3/b3
        res = y
    elif reduction == "min":
        res = jnp.min(y, axis=-1, keepdims=True)
    elif reduction == "max":
        res = jnp.max(y, axis=-1, keepdims=True)
    else:                                  # "mix"
        res = (lam * jnp.min(y, axis=-1, keepdims=True)
               + (1.0 - lam) * jnp.max(y, axis=-1, keepdims=True))

    # Lane-dense store: batch goes on the lane axis (XLU transpose slot is otherwise idle).
    o_ref[...] = jnp.transpose(res).astype(o_ref.dtype)


def pack_ensemble_params(params, compute_dtype=jnp.float32, force_per_member_layer2=False):
    """Pack per-member weights once (cache the result; do not call per forward)."""
    w1, b1, w2, b2, w3, b3 = (params["w1"], params["b1"], params["w2"],
                              params["b2"], params["w3"], params["b3"])
    E, D, H = w1.shape
    EH = E * H
    ehp_fused = _round_up(EH, _LANE)
    fuse_l2 = (ehp_fused <= _FUSE_L2_MAX_EHP) and not force_per_member_layer2
    EHp = ehp_fused if fuse_l2 else EH     # lane padding only pays off in the fused path
    pad = EHp - EH

    w1p = jnp.transpose(w1, (1, 0, 2)).reshape(D, EH)                    # (D, E*H), e-major
    w1p = jnp.pad(w1p, ((0, 0), (0, pad))).astype(compute_dtype)
    b1p = jnp.pad(b1.reshape(1, EH), ((0, 0), (0, pad)))                  # f32 (added post-acc)

    if fuse_l2:
        eye = jnp.eye(E, dtype=w2.dtype)
        w2p = (w2[:, :, None, :] * eye[:, None, :, None]).reshape(EH, EH)
        w2p = jnp.pad(w2p, ((0, pad), (0, pad))).astype(compute_dtype)    # block-diag (EHp,EHp)
    else:
        w2p = w2.astype(compute_dtype)                                    # raw (E, H, H)
    b2p = jnp.pad(b2.reshape(1, EH), ((0, 0), (0, pad)))

    eye3 = jnp.eye(E, dtype=w3.dtype)
    w3_members = (w3[:, :, 0][:, :, None] * eye3[:, None, :]).reshape(EH, E)
    w3_members = jnp.pad(w3_members, ((0, pad), (0, 0))).astype(compute_dtype)  # (EHp, E)
    b3_members = b3.reshape(1, E)

    # Mean folded into layer 3 (mean is linear): stacked per-member column / E, averaged bias.
    w3_mean = jnp.pad(w3.reshape(EH, 1) / E, ((0, pad), (0, 0))).astype(compute_dtype)
    b3_mean = jnp.mean(b3).reshape(1, 1)

    return {
        "w1": w1p, "b1": b1p, "w2": w2p, "b2": b2p,
        "w3_members": w3_members, "b3_members": b3_members,
        "w3_mean": w3_mean, "b3_mean": b3_mean,
        "fuse_l2": fuse_l2, "E": E, "H": H, "D": D, "EHp": EHp,
    }


def ensemble_z_forward(x, packed, reduction="mean", lam=0.75):
    """Pallas EnsembleZFunction.forward.

    x: (B, D).  Returns (B, 1) for mean/min/max/mix, (E, B, 1) for 'none'.
    """
    if reduction not in ("mean", "min", "max", "mix", "none"):
        raise ValueError(f"unsupported reduction: {reduction}")

    E, H, D, EHp = packed["E"], packed["H"], packed["D"], packed["EHp"]
    fuse_l2 = packed["fuse_l2"]
    compute_dtype = packed["w1"].dtype

    if reduction == "mean":
        w3, b3 = packed["w3_mean"], packed["b3_mean"]
    else:
        w3, b3 = packed["w3_members"], packed["b3_members"]
    w3_cols = w3.shape[1]
    out_rows = E if reduction == "none" else 1

    B = x.shape[0]
    TB, n_tiles = _choose_batch_tiling(B)
    B_pad = TB * n_tiles
    x = x.astype(compute_dtype)
    if B_pad != B:
        x = jnp.pad(x, ((0, B_pad - B), (0, 0)))

    if fuse_l2:
        w2_spec = pl.BlockSpec((EHp, EHp), lambda i: (0, 0))
        w2_elems = EHp * EHp
    else:
        w2_spec = pl.BlockSpec((E, H, H), lambda i: (0, 0, 0))
        w2_elems = E * H * H

    # VMEM budget from the real footprint (x/out double-buffered, weights conservatively
    # counted twice, h1/h2/y activations in f32) + margin.  Capped at the v7x-safe 64 MiB.
    isz = jnp.dtype(compute_dtype).itemsize
    est = (2 * isz * (TB * D + D * EHp + w2_elems + EHp * w3_cols)
           + 2 * 4 * (2 * EHp + w3_cols)                 # biases (f32)
           + 4 * TB * (2 * EHp + max(E, w3_cols))        # h1, h2, y
           + 2 * 4 * out_rows * TB)                      # output blocks
    vmem_limit = min(int(est * 1.3) + (2 << 20), 64 << 20)

    kernel = functools.partial(_ensemble_z_kernel, reduction=reduction, lam=float(lam),
                               fuse_l2=fuse_l2, n_members=E, hidden=H)

    out = pl.pallas_call(
        kernel,
        out_shape=jax.ShapeDtypeStruct((out_rows, B_pad), jnp.float32),
        grid_spec=pltpu.PrefetchScalarGridSpec(
            num_scalar_prefetch=0,
            grid=(n_tiles,),
            in_specs=[
                pl.BlockSpec((TB, D), lambda i: (i, 0)),      # x batch tile
                pl.BlockSpec((D, EHp), lambda i: (0, 0)),     # W1 (resident)
                pl.BlockSpec((1, EHp), lambda i: (0, 0)),     # b1
                w2_spec,                                      # W2 (block-diag or per-member)
                pl.BlockSpec((1, EHp), lambda i: (0, 0)),     # b2
                pl.BlockSpec((EHp, w3_cols), lambda i: (0, 0)),  # W3 (mean-folded or per-member)
                pl.BlockSpec((1, w3_cols), lambda i: (0, 0)),    # b3
            ],
            # Lane-dense output: batch on the lane axis, one block per batch tile.
            out_specs=pl.BlockSpec((out_rows, TB), lambda i: (0, i)),
        ),
        compiler_params=pltpu.CompilerParams(
            dimension_semantics=("parallel",),
            vmem_limit_bytes=vmem_limit),
    )(x, packed["w1"], packed["b1"], packed["w2"], packed["b2"], w3, b3)

    out = out[:, :B]
    if reduction == "none":
        return out[:, :, None]            # (E, B, 1) — matches torch.cat(dim=0), no transpose
    return out[0][:, None]                # (B, 1)


def ensemble_z_reference(x, params, reduction="mean", lam=0.75):
    """Pure-JAX reference matching the torch semantics."""
    w1, b1, w2, b2, w3, b3 = (params["w1"], params["b1"], params["w2"],
                              params["b2"], params["w3"], params["b3"])
    h1 = jnp.maximum(jnp.einsum("bd,edh->ebh", x, w1) + b1, 0.0)
    h2 = jnp.maximum(jnp.einsum("ebh,ehk->ebk", h1, w2) + b2, 0.0)
    y = jnp.einsum("ebh,eho->ebo", h2, w3) + b3          # (E, B, 1)
    if reduction == "mean":
        return y.mean(axis=0)
    if reduction == "min":
        return y.min(axis=0)
    if reduction == "max":
        return y.max(axis=0)
    if reduction == "mix":
        return lam * y.min(axis=0) + (1.0 - lam) * y.max(axis=0)
    return y


def init_params(key, n_ensembles, obs_dim, hidden):
    ks = jax.random.split(key, 6)
    scale1 = 1.0 / jnp.sqrt(obs_dim)
    scale2 = 1.0 / jnp.sqrt(hidden)
    return {
        "w1": jax.random.normal(ks[0], (n_ensembles, obs_dim, hidden), jnp.float32) * scale1,
        "b1": jax.random.normal(ks[1], (n_ensembles, 1, hidden), jnp.float32) * 0.01,
        "w2": jax.random.normal(ks[2], (n_ensembles, hidden, hidden), jnp.float32) * scale2,
        "b2": jax.random.normal(ks[3], (n_ensembles, 1, hidden), jnp.float32) * 0.01,
        "w3": jax.random.normal(ks[4], (n_ensembles, hidden, 1), jnp.float32) * scale2,
        "b3": jax.random.normal(ks[5], (n_ensembles, 1, 1), jnp.float32) * 0.01,
    }


if __name__ == "__main__":
    D, H, E = 32, 32, 3
    key = jax.random.PRNGKey(0)
    kx, kp = jax.random.split(key)
    params = init_params(kp, E, D, H)

    # Pack once (cached across all forward calls / reductions).
    packed_f32 = pack_ensemble_params(params)
    packed_pm = pack_ensemble_params(params, force_per_member_layer2=True)
    packed_bf16 = pack_ensemble_params(params, compute_dtype=jnp.bfloat16)

    # 8: exact single tile; 5: sublane-padding path; 300: multi-tile lane-aligned path.
    for B in (8, 5, 300):
        x = jax.random.normal(kx, (B, D), jnp.float32)
        for red in ("mean", "min", "max", "mix", "none"):
            out = jax.block_until_ready(ensemble_z_forward(x, packed_f32, reduction=red))
            ref = ensemble_z_reference(x, params, reduction=red)
            assert out.shape == ref.shape, (red, B, out.shape, ref.shape)
            assert jnp.allclose(out, ref, atol=1e-4, rtol=1e-4), \
                f"MISMATCH for reduction={red}, B={B}"

    # Per-member layer-2 fallback (used when E*H is large); validated here at small shape.
    x = jax.random.normal(kx, (8, D), jnp.float32)
    for red in ("mean", "min", "none"):
        out = jax.block_until_ready(ensemble_z_forward(x, packed_pm, reduction=red))
        ref = ensemble_z_reference(x, params, reduction=red)
        assert out.shape == ref.shape
        assert jnp.allclose(out, ref, atol=1e-4, rtol=1e-4), f"PM MISMATCH {red}"

    # bf16 inputs + f32 accumulation (bf16-native v6e/v7x MXU); looser tolerance as advised.
    out = jax.block_until_ready(ensemble_z_forward(x, packed_bf16, reduction="mean"))
    ref = ensemble_z_reference(x, params, reduction="mean")
    assert out.shape == ref.shape
    assert jnp.allclose(out, ref, atol=5e-2, rtol=5e-2), "BF16 MISMATCH"

    print("KERNEL_OK")
</pallas_src>

<mosaic_0001>
module attributes {stable_mosaic.version = 11 : i64} {
  func.func @_ensemble_z_kernel(%arg0: i32, %arg1: memref<8x32xf32, #tpu.memory_space<vmem>>, %arg2: memref<32x128xf32, #tpu.memory_space<vmem>>, %arg3: memref<1x128xf32, #tpu.memory_space<vmem>>, %arg4: memref<128x128xf32, #tpu.memory_space<vmem>>, %arg5: memref<1x128xf32, #tpu.memory_space<vmem>>, %arg6: memref<128x1xf32, #tpu.memory_space<vmem>>, %arg7: memref<1x1xf32, #tpu.memory_space<vmem>>, %arg8: memref<1x8xf32, #tpu.memory_space<vmem>>) attributes {dimension_semantics = [#tpu.dimension_semantics<parallel>], iteration_bounds = array<i64: 1>, scalar_prefetch = 0 : i64, scratch_operands = 0 : i64, tpu.core_type = #tpu.core_type<tc>, window_params = [{transform_indices = @transform_0, window_bounds = array<i64: 8, 32>}, {pipeline_mode = #tpu.pipeline_mode<synchronous>, transform_indices = @transform_1, window_bounds = array<i64: 32, 128>}, {pipeline_mode = #tpu.pipeline_mode<synchronous>, transform_indices = @transform_2, window_bounds = array<i64: 1, 128>}, {pipeline_mode = #tpu.pipeline_mode<synchronous>, transform_indices = @transform_3, window_bounds = array<i64: 128, 128>}, {pipeline_mode = #tpu.pipeline_mode<synchronous>, transform_indices = @transform_4, window_bounds = array<i64: 1, 128>}, {pipeline_mode = #tpu.pipeline_mode<synchronous>, transform_indices = @transform_5, window_bounds = array<i64: 128, 1>}, {pipeline_mode = #tpu.pipeline_mode<synchronous>, transform_indices = @transform_6, window_bounds = array<i64: 1, 1>}, {transform_indices = @transform_7, window_bounds = array<i64: 1, 8>}]} {
    %c0 = arith.constant 0 : index
    %c0_0 = arith.constant 0 : index
    %0 = vector.load %arg1[%c0, %c0_0] : memref<8x32xf32, #tpu.memory_space<vmem>>, vector<8x32xf32>
    %c0_1 = arith.constant 0 : index
    %c0_2 = arith.constant 0 : index
    %1 = vector.load %arg2[%c0_1, %c0_2] : memref<32x128xf32, #tpu.memory_space<vmem>>, vector<32x128xf32>
    %cst = arith.constant dense<0.000000e+00> : vector<8x128xf32>
    %2 = tpu.matmul %0, %1, %cst {dimension_numbers = #tpu.dot_dimension_numbers<[1], [0], [0], [1], [0, 0, 1, 1], [], []>} : vector<8x32xf32>, vector<32x128xf32>, vector<8x128xf32> -> vector<8x128xf32>
    %c0_3 = arith.constant 0 : index
    %c0_4 = arith.constant 0 : index
    %3 = vector.load %arg3[%c0_3, %c0_4] : memref<1x128xf32, #tpu.memory_space<vmem>>, vector<1x128xf32>
    %4 = vector.broadcast %3 : vector<1x128xf32> to vector<8x128xf32>
    %5 = arith.addf %2, %4 : vector<8x128xf32>
    %cst_5 = arith.constant 0.000000e+00 : f32
    %6 = vector.broadcast %cst_5 : f32 to vector<8x128xf32>
    %7 = arith.maximumf %5, %6 : vector<8x128xf32>
    %c0_6 = arith.constant 0 : index
    %c0_7 = arith.constant 0 : index
    %8 = vector.load %arg4[%c0_6, %c0_7] : memref<128x128xf32, #tpu.memory_space<vmem>>, vector<128x128xf32>
    %cst_8 = arith.constant dense<0.000000e+00> : vector<8x128xf32>
    %9 = tpu.matmul %7, %8, %cst_8 {dimension_numbers = #tpu.dot_dimension_numbers<[1], [0], [0], [1], [0, 0, 1, 1], [], []>} : vector<8x128xf32>, vector<128x128xf32>, vector<8x128xf32> -> vector<8x128xf32>
    %c0_9 = arith.constant 0 : index
    %c0_10 = arith.constant 0 : index
    %10 = vector.load %arg5[%c0_9, %c0_10] : memref<1x128xf32, #tpu.memory_space<vmem>>, vector<1x128xf32>
    %11 = vector.broadcast %10 : vector<1x128xf32> to vector<8x128xf32>
    %12 = arith.addf %9, %11 : vector<8x128xf32>
    %cst_11 = arith.constant 0.000000e+00 : f32
    %13 = vector.broadcast %cst_11 : f32 to vector<8x128xf32>
    %14 = arith.maximumf %12, %13 : vector<8x128xf32>
    %c0_12 = arith.constant 0 : index
    %c0_13 = arith.constant 0 : index
    %15 = vector.load %arg6[%c0_12, %c0_13] : memref<128x1xf32, #tpu.memory_space<vmem>>, vector<128x1xf32>
    %cst_14 = arith.constant dense<0.000000e+00> : vector<8x1xf32>
    %16 = tpu.matmul %14, %15, %cst_14 {dimension_numbers = #tpu.dot_dimension_numbers<[1], [0], [0], [1], [0, 0, 1, 1], [], []>} : vector<8x128xf32>, vector<128x1xf32>, vector<8x1xf32> -> vector<8x1xf32>
    %c0_15 = arith.constant 0 : index
    %c0_16 = arith.constant 0 : index
    %17 = vector.load %arg7[%c0_15, %c0_16] : memref<1x1xf32, #tpu.memory_space<vmem>>, vector<1x1xf32>
    %18 = vector.broadcast %17 : vector<1x1xf32> to vector<8x1xf32>
    %19 = arith.addf %16, %18 : vector<8x1xf32>
    %20 = tpu.transpose %19, [1, 0] : vector<8x1xf32> -> vector<1x8xf32>
    %c0_17 = arith.constant 0 : index
    %c0_18 = arith.constant 0 : index
    %21 = vector.load %arg8[%c0_17, %c0_18] : memref<1x8xf32, #tpu.memory_space<vmem>>, vector<1x8xf32>
    tpu.vector_store %arg8[%c0_17, %c0_18], %20 {strides = array<i32>} : memref<1x8xf32, #tpu.memory_space<vmem>>, vector<1x8xf32>,
    return
  }
  func.func @transform_0(%arg0: i32) -> (i32, i32) {
    %c0_i32 = arith.constant 0 : i32
    %c0_i32_0 = arith.constant 0 : i32
    return %arg0, %c0_i32 : i32, i32
  }
  func.func @transform_1(%arg0: i32) -> (i32, i32) {
    %c0_i32 = arith.constant 0 : i32
    %c0_i32_0 = arith.constant 0 : i32
    %c0_i32_1 = arith.constant 0 : i32
    return %c0_i32, %c0_i32_0 : i32, i32
  }
  func.func @transform_2(%arg0: i32) -> (i32, i32) {
    %c0_i32 = arith.constant 0 : i32
    %c0_i32_0 = arith.constant 0 : i32
    %c0_i32_1 = arith.constant 0 : i32
    return %c0_i32, %c0_i32_0 : i32, i32
  }
  func.func @transform_3(%arg0: i32) -> (i32, i32) {
    %c0_i32 = arith.constant 0 : i32
    %c0_i32_0 = arith.constant 0 : i32
    %c0_i32_1 = arith.constant 0 : i32
    return %c0_i32, %c0_i32_0 : i32, i32
  }
  func.func @transform_4(%arg0: i32) -> (i32, i32) {
    %c0_i32 = arith.constant 0 : i32
    %c0_i32_0 = arith.constant 0 : i32
    %c0_i32_1 = arith.constant 0 : i32
    return %c0_i32, %c0_i32_0 : i32, i32
  }
  func.func @transform_5(%arg0: i32) -> (i32, i32) {
    %c0_i32 = arith.constant 0 : i32
    %c0_i32_0 = arith.constant 0 : i32
    %c0_i32_1 = arith.constant 0 : i32
    return %c0_i32, %c0_i32_0 : i32, i32
  }
  func.func @transform_6(%arg0: i32) -> (i32, i32) {
    %c0_i32 = arith.constant 0 : i32
    %c0_i32_0 = arith.constant 0 : i32
    %c0_i32_1 = arith.constant 0 : i32
    return %c0_i32, %c0_i32_0 : i32, i32
  }
  func.func @transform_7(%arg0: i32) -> (i32, i32) {
    %c0_i32 = arith.constant 0 : i32
    %c0_i32_0 = arith.constant 0 : i32
    return %c0_i32, %arg0 : i32, i32
  }
}

</mosaic_0001>

<llo_original>
// kernel: tpu_custom_call.1
$region0: #{tpu_custom_call.1}
  #allocation0 [shape = 'u32[]', space=smem, size = 0x4, offset = 0x4, fixed_abs, tag = 'smem constant byte address 0x4 - core index']
  #allocation1 [shape = 'u32[72,128]{1,0:T(1,128)}', space=vmem, size = 0x9000, scoped, tag = 'internal scratch']
  #allocation2 [shape = 'f32[1,1]{1,0:T(1,128)S(1)}', space=vmem, size = 0x200, scoped, tag = 'scoped memory for tpu_custom_call.1']
  %s0 = inlined_call_operand.hbm [shape: f32[8,32], index: 0, kind: input, shape index: {}]
  %s1 = inlined_call_operand.hbm [shape: f32[32,128], index: 1, kind: input, shape index: {}]
  %s2 = inlined_call_operand.vmem [shape: f32[1,128], index: 2, kind: input, shape index: {}]
  %s3 = inlined_call_operand.vmem [shape: f32[128,128], index: 3, kind: input, shape index: {}]
  %s4 = inlined_call_operand.vmem [shape: f32[1,128], index: 4, kind: input, shape index: {}]
  %s5 = inlined_call_operand.vmem [shape: f32[128,1], index: 5, kind: input, shape index: {}]
  %s6 = inlined_call_operand.<no memory space> [shape: f32[1,1], index: 6, kind: input, shape index: {}]
  %s7 = inlined_call_operand.hbm [shape: f32[1,8], index: 7, kind: output, shape index: {}]
  %s8 = sld [smem:[#allocation0]]
  $region46: #{tpu_custom_call.1} parent=0
    _
  %s10 = ssub.s32 1, %s8
  %s11 = scalar_select 0, %s10, %s8
  %v12 = vstv %s6
  %13 = vst [vmem:[#allocation2] sm:$0x1] %v12
  $region1: #{tpu_custom_call.1} parent=0
    #allocation3 [shape = 'u8[4096]{0}', space=vmem, size = 0x1000, scoped, tag = 'input window, operand 0, single buffered']
    #allocation4 [shape = 's32[1]{0}', space=sflag, size = 0x4, scoped, tag = 'scoped memory for tpu_custom_call.1']
    #allocation5 [shape = 's32[1]{0}', space=sflag, size = 0x4, scoped, tag = 'scoped memory for tpu_custom_call.1']
    #allocation6 [shape = 'u8[16384]{0}', space=vmem, size = 0x4000, scoped, tag = 'input window, operand 1, single buffered']
    #allocation7 [shape = 's32[1]{0}', space=sflag, size = 0x4, scoped, tag = 'scoped memory for tpu_custom_call.1']
    #allocation8 [shape = 'u8[512]{0}', space=vmem, size = 0x400, scoped, tag = 'output window, operand 0, single buffered']
    %14 = vsyncpa [#allocation4], 0
    %15 = vsyncpa [#allocation7], 0
    %16 = vsyncpa [#allocation5], 0
    // Predicated region
    $region2: #{tpu_custom_call.1} parent=1 // pred_check
      _
    $region3: #{tpu_custom_call.1} parent=1 // pred_check_branch
      %18 = sbr.rel (0) target = $region5
    $region4: #{tpu_custom_call.1} parent=1 // pred_region
      %20 = vsyncadd [#allocation4], 0
      %s22 = sshll.u32 %s0, 4
      %s23 = int_to_ptr.hbm [resolvable:$true] %s22
      %s24 = sshll.u32 [#allocation3], 4
      %s25 = int_to_ptr.vmem [resolvable:$true] %s24
      %27 = dma.hbm_to_vmem [thread:$0]  %s23, 128, %s25, [#allocation4]
    $region5: #{tpu_custom_call.1} parent=1 // pred_fallthru
      _
    // Predicated region
    $region6: #{tpu_custom_call.1} parent=1 // pred_check
      _
    $region7: #{tpu_custom_call.1} parent=1 // pred_check_branch
      %29 = sbr.rel (0) target = $region9
    $region8: #{tpu_custom_call.1} parent=1 // pred_region
      %31 = vsyncadd [#allocation7], 0
      %s32 = sshll.u32 %s1, 4
      %s33 = int_to_ptr.hbm [resolvable:$true] %s32
      %s34 = sshll.u32 [#allocation6], 4
      %s35 = int_to_ptr.vmem [resolvable:$true] %s34
      %40 = dma.hbm_to_vmem [thread:$0]  %s33, 512, %s35, [#allocation7], 128, 128, 8
    $region9: #{tpu_custom_call.1} parent=1 // pred_fallthru
      _
    // Predicated region
    $region10: #{tpu_custom_call.1} parent=1 // pred_check
      _
    $region11: #{tpu_custom_call.1} parent=1 // pred_check_branch
      %42 = sbr.rel (0) target = $region13
    $region12: #{tpu_custom_call.1} parent=1 // pred_region
      _
    $region13: #{tpu_custom_call.1} parent=1 // pred_fallthru
      _
    // Predicated region
    $region14: #{tpu_custom_call.1} parent=1 // pred_check
      _
    $region15: #{tpu_custom_call.1} parent=1 // pred_check_branch
      %44 = sbr.rel (0) target = $region17
    $region16: #{tpu_custom_call.1} parent=1 // pred_region
      _
    $region17: #{tpu_custom_call.1} parent=1 // pred_fallthru
      _
    // Predicated region
    $region18: #{tpu_custom_call.1} parent=1 // pred_check
      _
    $region19: #{tpu_custom_call.1} parent=1 // pred_check_branch
      %46 = sbr.rel (0) target = $region21
    $region20: #{tpu_custom_call.1} parent=1 // pred_region
      _
    $region21: #{tpu_custom_call.1} parent=1 // pred_fallthru
      _
    // Predicated region
    $region22: #{tpu_custom_call.1} parent=1 // pred_check
      _
    $region23: #{tpu_custom_call.1} parent=1 // pred_check_branch
      %48 = sbr.rel (0) target = $region25
    $region24: #{tpu_custom_call.1} parent=1 // pred_region
      _
    $region25: #{tpu_custom_call.1} parent=1 // pred_fallthru
      _
    // Predicated region
    $region26: #{tpu_custom_call.1} parent=1 // pred_check
      _
    $region27: #{tpu_custom_call.1} parent=1 // pred_check_branch
      %50 = sbr.rel (0) target = $region29
    $region28: #{tpu_custom_call.1} parent=1 // pred_region
      _
    $region29: #{tpu_custom_call.1} parent=1 // pred_fallthru
      _
    // Predicated region
    $region30: #{tpu_custom_call.1} parent=1 // pred_check
      _
    $region31: #{tpu_custom_call.1} parent=1 // pred_check_branch
      %52 = sbr.rel (0) target = $region33
    $region32: #{tpu_custom_call.1} parent=1 // pred_region
      %54 = dma.done [#allocation4], 128
    $region33: #{tpu_custom_call.1} parent=1 // pred_fallthru
      _
    // Predicated region
    $region34: #{tpu_custom_call.1} parent=1 // pred_check
      _
    $region35: #{tpu_custom_call.1} parent=1 // pred_check_branch
      %56 = sbr.rel (0) target = $region37
    $region36: #{tpu_custom_call.1} parent=1 // pred_region
      %58 = dma.done [#allocation7], 512
    $region37: #{tpu_custom_call.1} parent=1 // pred_fallthru
      _
    %v59 = vld [vmem:[#allocation3] sm:$0xff]
    %v60 = vld [vmem:[#allocation6] sm:$0xff]
    %v61 = vld [vmem:[#allocation6 + $0x8] sm:$0xff]
    %v62 = vld [vmem:[#allocation6 + $0x10] sm:$0xff]
    %v63 = vld [vmem:[#allocation6 + $0x18] sm:$0xff]
    %v64 = vld [vmem:[%s2] sm:$0x1]
    %v66 = vperm.slane %v64, 0
    %vm68 = vcmask 261120
    %v70 = vsel %vm68, %v59, 0
    %72 = vmatpush.msra.mxu0 0.0
    %73 = vmatpush.msra.mxu0 0.0
    %74 = vmatpush.msra.mxu0 0.0
    %75 = vmatpush.msra.mxu0 0.0
    %76 = vmatpush.msra.mxu0 0.0
    %77 = vmatpush.msra.mxu0 0.0
    %78 = vmatpush.msra.mxu0 0.0
    %79 = vmatpush.msra.mxu0 0.0
    %80 = vmatpush.msra.mxu0 0.0
    %81 = vmatpush.msra.mxu0 0.0
    %82 = vmatpush.msra.mxu0 0.0
    %83 = vmatpush.msra.mxu0 0.0
    %84 = vmatpush.msra.mxu0 %v63
    %85 = vmatpush.msra.mxu0 %v62
    %86 = vmatpush.msra.mxu0 %v61
    %87 = vmatpush.msra.mxu0 %v60
    %88 = vmatmul.f32.gmra.mxu0 %v70
    %v89 = vpop.f32.mrf.mxu0
    %v90 = vadd.f32 %v66, %v89
    %91 = vdwg.mxu0
    %v92 = vmax.f32 %v90, 0.0
    %v93 = vld [vmem:[%s3] sm:$0xff]
    %v94 = vld [vmem:[%s3 + $0x8] sm:$0xff]
    %v95 = vld [vmem:[%s3 + $0x10] sm:$0xff]
    %v96 = vld [vmem:[%s3 + $0x18] sm:$0xff]
    %v97 = vld [vmem:[%s3 + $0x20] sm:$0xff]
    %v98 = vld [vmem:[%s3 + $0x28] sm:$0xff]
    %v99 = vld [vmem:[%s3 + $0x30] sm:$0xff]
    %v100 = vld [vmem:[%s3 + $0x38] sm:$0xff]
    %v101 = vld [vmem:[%s3 + $0x40] sm:$0xff]
    %v102 = vld [vmem:[%s3 + $0x48] sm:$0xff]
    %v103 = vld [vmem:[%s3 + $0x50] sm:$0xff]
    %v104 = vld [vmem:[%s3 + $0x58] sm:$0xff]
    %v105 = vld [vmem:[%s3 + $0x60] sm:$0xff]
    %v106 = vld [vmem:[%s3 + $0x68] sm:$0xff]
    %v107 = vld [vmem:[%s3 + $0x70] sm:$0xff]
    %v108 = vld [vmem:[%s3 + $0x78] sm:$0xff]
    %v109 = vld [vmem:[%s4] sm:$0x1]
    %v111 = vperm.slane %v109, 0
    %113 = vmatpush.msra.mxu0 %v108
    %114 = vmatpush.msra.mxu0 %v107
    %115 = vmatpush.msra.mxu0 %v106
    %116 = vmatpush.msra.mxu0 %v105
    %117 = vmatpush.msra.mxu0 %v104
    %118 = vmatpush.msra.mxu0 %v103
    %119 = vmatpush.msra.mxu0 %v102
    %120 = vmatpush.msra.mxu0 %v101
    %121 = vmatpush.msra.mxu0 %v100
    %122 = vmatpush.msra.mxu0 %v99
    %123 = vmatpush.msra.mxu0 %v98
    %124 = vmatpush.msra.mxu0 %v97
    %125 = vmatpush.msra.mxu0 %v96
    %126 = vmatpush.msra.mxu0 %v95
    %127 = vmatpush.msra.mxu0 %v94
    %128 = vmatpush.msra.mxu0 %v93
    %129 = vmatmul.f32.gmra.mxu0 %v92
    %v130 = vpop.f32.mrf.mxu0
    %v131 = vadd.f32 %v111, %v130
    %132 = vdwg.mxu0
    %v133 = vmax.f32 %v131, 0.0
    %v134 = vld [vmem:[%s5] sm:$0xff]
    %v135 = vld [vmem:[%s5 + $0x8] sm:$0xff]
    %v136 = vld [vmem:[%s5 + $0x10] sm:$0xff]
    %v137 = vld [vmem:[%s5 + $0x18] sm:$0xff]
    %v138 = vld [vmem:[%s5 + $0x20] sm:$0xff]
    %v139 = vld [vmem:[%s5 + $0x28] sm:$0xff]
    %v140 = vld [vmem:[%s5 + $0x30] sm:$0xff]
    %v141 = vld [vmem:[%s5 + $0x38] sm:$0xff]
    %v142 = vld [vmem:[%s5 + $0x40] sm:$0xff]
    %v143 = vld [vmem:[%s5 + $0x48] sm:$0xff]
    %v144 = vld [vmem:[%s5 + $0x50] sm:$0xff]
    %v145 = vld [vmem:[%s5 + $0x58] sm:$0xff]
    %v146 = vld [vmem:[%s5 + $0x60] sm:$0xff]
    %v147 = vld [vmem:[%s5 + $0x68] sm:$0xff]
    %v148 = vld [vmem:[%s5 + $0x70] sm:$0xff]
    %v149 = vld [vmem:[%s5 + $0x78] sm:$0xff]
    %v150 = vld [vmem:[#allocation2] sm:$0x1]
    %v152 = vperm.slane %v150, 0
    %154 = vmatpush.msra.mxu0 %v149
    %155 = vmatpush.msra.mxu0 %v148
    %156 = vmatpush.msra.mxu0 %v147
    %157 = vmatpush.msra.mxu0 %v146
    %158 = vmatpush.msra.mxu0 %v145
    %159 = vmatpush.msra.mxu0 %v144
    %160 = vmatpush.msra.mxu0 %v143
    %161 = vmatpush.msra.mxu0 %v142
    %162 = vmatpush.msra.mxu0 %v141
    %163 = vmatpush.msra.mxu0 %v140
    %164 = vmatpush.msra.mxu0 %v139
    %165 = vmatpush.msra.mxu0 %v138
    %166 = vmatpush.msra.mxu0 %v137
    %167 = vmatpush.msra.mxu0 %v136
    %168 = vmatpush.msra.mxu0 %v135
    %169 = vmatpush.msra.mxu0 %v134
    %170 = vmatmul.f32.gmra.mxu0 %v133
    %v171 = vpop.f32.mrf.mxu0
    %v172 = vadd.f32 %v152, %v171
    %173 = vdwg.mxu0
    %174 = vxpose.xlu0.b32.start [1/16] %v172, 128
    %175 = vxpose.xlu0.b32.cont [2/16] 0.0, 128
    %176 = vxpose.xlu0.b32.cont [3/16] 0.0, 128
    %177 = vxpose.xlu0.b32.cont [4/16] 0.0, 128
    %178 = vxpose.xlu0.b32.cont [5/16] 0.0, 128
    %179 = vxpose.xlu0.b32.cont [6/16] 0.0, 128
    %180 = vxpose.xlu0.b32.cont [7/16] 0.0, 128
    %181 = vxpose.xlu0.b32.cont [8/16] 0.0, 128
    %182 = vxpose.xlu0.b32.cont [9/16] 0.0, 128
    %183 = vxpose.xlu0.b32.cont [10/16] 0.0, 128
    %184 = vxpose.xlu0.b32.cont [11/16] 0.0, 128
    %185 = vxpose.xlu0.b32.cont [12/16] 0.0, 128
    %186 = vxpose.xlu0.b32.cont [13/16] 0.0, 128
    %187 = vxpose.xlu0.b32.cont [14/16] 0.0, 128
    %188 = vxpose.xlu0.b32.cont [15/16] 0.0, 128
    %189 = vxpose.xlu0.b32.end [16/16] 0.0, 128
    %v190 = vpop.trf.xlu0
    %v191 = vpop.trf.xlu0
    %v192 = vpop.trf.xlu0
    %v193 = vpop.trf.xlu0
    %v194 = vpop.trf.xlu0
    %v195 = vpop.trf.xlu0
    %v196 = vpop.trf.xlu0
    %v197 = vpop.trf.xlu0
    %v198 = vpop.trf.xlu0
    %v199 = vpop.trf.xlu0
    %v200 = vpop.trf.xlu0
    %v201 = vpop.trf.xlu0
    %v202 = vpop.trf.xlu0
    %v203 = vpop.trf.xlu0
    %v204 = vpop.trf.xlu0
    %v205 = vpop.trf.xlu0
    %vm206 = vcmask 57344
    %207 = vst.msk [vmem:[#allocation8] sm:$0x1] %vm206, %v190
    // Predicated region
    $region38: #{tpu_custom_call.1} parent=1 // pred_check
      _
    $region39: #{tpu_custom_call.1} parent=1 // pred_check_branch
      %209 = sbr.rel (0) target = $region41
    $region40: #{tpu_custom_call.1} parent=1 // pred_region
      %211 = vsyncadd [#allocation5], 0
      %s213 = sshll.u32 [#allocation8], 4
      %s214 = int_to_ptr.vmem [resolvable:$true] %s213
      %s215 = sshll.u32 %s7, 4
      %s216 = int_to_ptr.hbm [resolvable:$true] %s215
      %218 = dma.vmem_to_hbm [thread:$0]  %s214, 16, %s216, [#allocation5]
    $region41: #{tpu_custom_call.1} parent=1 // pred_fallthru
      _
    // Predicated region
    $region42: #{tpu_custom_call.1} parent=1 // pred_check
      _
    $region43: #{tpu_custom_call.1} parent=1 // pred_check_branch
      %220 = sbr.rel (0) target = $region45
    $region44: #{tpu_custom_call.1} parent=1 // pred_region
      %222 = dma.done [#allocation5], 16
    $region45: #{tpu_custom_call.1} parent=1 // pred_fallthru
      _
    %223 = vsyncpa [#allocation4], 1
    %224 = vsyncpa [#allocation7], 1
    %225 = vsyncpa [#allocation5], 1

</llo_original>
